<compile_context>
chip_gen: v5e
topology: v5e:2x2
jax: 0.10.0
libtpu: 0.0.40
codegen_flags: <defaults>
</compile_context>

<pallas_src>
import functools

import jax
import jax.numpy as jnp
from jax import lax
from jax.experimental import pallas as pl
from jax.experimental.pallas import tpu as pltpu


# ----------------------------- Pallas kernel ------------------------------- #

def _prompt_ctx_kernel(lam_ref,                      # SMEM (1, 1)
                       user_ref, self_ref,           # VMEM (B, D)
                       neigh_ref, rel_ref,           # VMEM (B, K, D)
                       w_agg_ref, b_agg_ref,         # VMEM (D, D), (1, D)
                       w_lin_ref, b_lin_ref,         # VMEM (n_ctx, B), (n_ctx, 1)
                       ctx_ref,                      # VMEM (n_ctx, D)
                       tmpl_hbm_ref,                 # HBM (n_cls, L, D), aliased to out
                       out_hbm_ref,                  # HBM (n_cls, L, D)
                       slab_vmem,                    # VMEM (n_cls, n_ctx, D) scratch
                       dma_sem,                      # DMA semaphore
                       *, n_prefix):
    """Computes ctx_new once and DMAs only the ctx slab of the prompts buffer.

    The prompts output buffer is aliased with the pre-assembled template, so
    the frozen prefix/suffix rows are never read nor re-written here.
    """
    del tmpl_hbm_ref  # same HBM buffer as out_hbm_ref; prefix/suffix untouched.

    user = user_ref[...]                                     # (B, D)
    rel = rel_ref[...]                                       # (B, K, D)
    neigh = neigh_ref[...]                                   # (B, K, D)

    # user-relation attention scores + softmax over the K neighbors.
    scores = jnp.sum(user[:, None, :] * rel, axis=-1)        # (B, K)
    scores = scores - jnp.max(scores, axis=-1, keepdims=True)
    e = jnp.exp(scores)
    p = e / jnp.sum(e, axis=-1, keepdims=True)               # (B, K)

    # Weighted neighbor aggregation ("sum" aggregator).
    agg = jnp.sum(p[:, :, None] * neigh, axis=1)             # (B, D)
    x = self_ref[...] + agg                                  # (B, D)

    # Aggregator Linear(dim, dim) + tanh.  Contraction over w_agg's *input*
    # dim folds the PyTorch-layout transpose; f32 operands for parity
    # (this path runs exactly once per call).
    h = lax.dot_general(x, w_agg_ref[...],
                        dimension_numbers=(((1,), (1,)), ((), ())),
                        preferred_element_type=jnp.float32) + b_agg_ref[...]
    item = jnp.tanh(h)                                       # (B, D)

    # KGCN.Linear on item^T: c = W_lin @ item + b_lin, one (padded) MXU matmul.
    c = lax.dot_general(w_lin_ref[...], item,
                        dimension_numbers=(((1,), (0,)), ((), ())),
                        preferred_element_type=jnp.float32)
    c = c + b_lin_ref[...]                                   # (n_ctx, D)

    lam = lam_ref[0, 0]                                      # SMEM scalar
    ctx_new = ctx_ref[...] + lam * c                         # (n_ctx, D)

    # Broadcast to every class inside VMEM (small: n_cls*n_ctx*D) and write
    # ONLY the ctx slab of the aliased prompts buffer with one strided DMA.
    n_cls, n_ctx, dim = slab_vmem.shape
    slab_vmem[...] = jnp.broadcast_to(
        ctx_new[None, :, :], (n_cls, n_ctx, dim)).astype(slab_vmem.dtype)

    copy = pltpu.make_async_copy(
        slab_vmem, out_hbm_ref.at[:, pl.ds(n_prefix, n_ctx), :], dma_sem)
    copy.start()
    copy.wait()


# ------------------------------ JAX wrapper --------------------------------- #

def prompt_learner_pallas(lam, user_emb, self_vec, neigh_vec, rel_vec,
                          w_agg, b_agg, w_lin, b_lin, ctx, prompts_template,
                          *, n_prefix=1):
    """Single pallas_call: KGCN context (once) + ctx-slab-only write into the
    aliased prompts template."""
    n_cls, seq, dim = prompts_template.shape
    n_ctx = ctx.shape[0]

    lam_arr = jnp.asarray(lam, jnp.float32).reshape(1, 1)

    kernel = functools.partial(_prompt_ctx_kernel, n_prefix=n_prefix)

    vmem = pl.BlockSpec(memory_space=pltpu.MemorySpace.VMEM)
    in_specs = [
        pl.BlockSpec(memory_space=pltpu.MemorySpace.SMEM),   # lam (1,1)
        vmem,                                                # user_emb
        vmem,                                                # self_vec
        vmem,                                                # neigh_vec
        vmem,                                                # rel_vec
        vmem,                                                # w_agg
        vmem,                                                # b_agg
        vmem,                                                # w_lin
        vmem,                                                # b_lin
        vmem,                                                # ctx
        pl.BlockSpec(memory_space=pl.ANY),                   # prompts template (HBM)
    ]

    return pl.pallas_call(
        kernel,
        out_shape=jax.ShapeDtypeStruct((n_cls, seq, dim), prompts_template.dtype),
        in_specs=in_specs,
        out_specs=pl.BlockSpec(memory_space=pl.ANY),         # written via manual DMA
        scratch_shapes=[
            pltpu.VMEM((n_cls, n_ctx, dim), prompts_template.dtype),
            pltpu.SemaphoreType.DMA(()),
        ],
        input_output_aliases={10: 0},                        # template -> prompts
        compiler_params=pltpu.CompilerParams(has_side_effects=True),
    )(lam_arr, user_emb, self_vec, neigh_vec, rel_vec,
      w_agg, b_agg.reshape(1, dim), w_lin, b_lin.reshape(n_ctx, 1),
      ctx, prompts_template)


def prompt_learner_forward(params, lam):
    """Full PromptLearner.forward (isLinear path) using the fused Pallas kernel.

    Embedding-table gathers (torch.nn.Embedding lookups) stay in plain JAX glue.
    """
    # KGCN._get_neighbors + embedding lookups (glue)
    item_ids = params["item_idss"]                           # (B,)
    user_ids = params["user_ids"]                            # (B,)
    neigh_ent = params["adj_ent"][item_ids]                  # (B, K)
    neigh_rel = params["adj_rel"][item_ids]                  # (B, K)

    user_emb = params["usr_table"][user_ids]                 # (B, D)
    self_vec = params["ent_table"][item_ids]                 # (B, D)
    neigh_vec = params["ent_table"][neigh_ent]               # (B, K, D)
    rel_vec = params["rel_table"][neigh_rel]                 # (B, K, D)

    # TODO(synk): the embedding gathers could be fused into the kernel via
    # scalar-prefetch + manual DMA from the HBM tables; kept as XLA gathers.
    return prompt_learner_pallas(
        lam, user_emb, self_vec, neigh_vec, rel_vec,
        params["w_agg"], params["b_agg"], params["w_lin"], params["b_lin"],
        params["ctx"], params["prompts_template"],
        n_prefix=params["token_prefix"].shape[1])


# Pure-JAX reference for correctness checking.
def prompt_learner_reference(params, lam):
    item_ids = params["item_idss"]
    user_ids = params["user_ids"]
    neigh_ent = params["adj_ent"][item_ids]
    neigh_rel = params["adj_rel"][item_ids]
    user_emb = params["usr_table"][user_ids]
    self_vec = params["ent_table"][item_ids]
    neigh_vec = params["ent_table"][neigh_ent]
    rel_vec = params["rel_table"][neigh_rel]

    scores = jnp.sum(user_emb[:, None, :] * rel_vec, axis=-1)
    p = jax.nn.softmax(scores, axis=-1)
    agg = jnp.sum(p[:, :, None] * neigh_vec, axis=1)
    item = jnp.tanh((self_vec + agg) @ params["w_agg"].T + params["b_agg"])
    c = params["w_lin"] @ item + params["b_lin"][:, None]
    ctx_new = params["ctx"] + lam * c

    n_cls = params["token_prefix"].shape[0]
    ctx_b = jnp.broadcast_to(ctx_new[None], (n_cls,) + ctx_new.shape)
    return jnp.concatenate(
        [params["token_prefix"], ctx_b, params["token_suffix"]], axis=1)


# --------------------------------- main ------------------------------------- #

if __name__ == "__main__":
    key = jax.random.PRNGKey(0)
    ks = jax.random.split(key, 12)

    # Small synthetic shapes consistent with the module structure.
    n_cls = 8          # NCLASS == KGCN batch_size == len(item_idss)
    n_ctx = 4          # N_CTX (isLinear path: N_CTX in {4,16}, CSC=False)
    dim = 128          # ctx_dim == KGCN dim
    seq_len = 16       # token sequence length (77 in real CLIP)
    n_neighbor = 8     # KGCN n_neighbor
    num_user, num_ent, num_rel = 32, 64, 16
    lam = 0.1          # cfg.TRAINER.CAPKP.KGCN

    params = {
        # embedding tables (nn.Embedding)
        "usr_table": jax.random.normal(ks[0], (num_user, dim), jnp.float32) * 0.1,
        "ent_table": jax.random.normal(ks[1], (num_ent, dim), jnp.float32) * 0.1,
        "rel_table": jax.random.normal(ks[2], (num_rel + 1, dim), jnp.float32) * 0.1,
        # adjacency (KGCN._gen_adj)
        "adj_ent": jax.random.randint(ks[3], (num_ent, n_neighbor), 0, num_ent),
        "adj_rel": jax.random.randint(ks[4], (num_ent, n_neighbor), 0, num_rel + 1),
        # batch indices (item_idss buffer + train_loader user_ids)
        "item_idss": jax.random.randint(ks[5], (n_cls,), 0, num_ent),
        "user_ids": jax.random.randint(ks[6], (n_cls,), 0, num_user),
        # Aggregator Linear(dim, dim)
        "w_agg": jax.random.normal(ks[7], (dim, dim), jnp.float32) * 0.02,
        "b_agg": jnp.zeros((dim,), jnp.float32),
        # KGCN.Linear(batch_size, n_ctx)
        "w_lin": jax.random.normal(ks[8], (n_ctx, n_cls), jnp.float32) * 0.05,
        "b_lin": jnp.zeros((n_ctx,), jnp.float32),
        # learnable context + frozen token embeddings
        "ctx": jax.random.normal(ks[9], (n_ctx, dim), jnp.float32) * 0.02,
        "token_prefix": jax.random.normal(ks[10], (n_cls, 1, dim), jnp.float32) * 0.02,
        "token_suffix": jax.random.normal(
            ks[11], (n_cls, seq_len - 1 - n_ctx, dim), jnp.float32) * 0.02,
    }
    # Frozen prompts template (built ONCE, like a register_buffer): the kernel
    # only ever rewrites its ctx slab.  The ctx slot content is irrelevant.
    params["prompts_template"] = jnp.concatenate(
        [params["token_prefix"],
         jnp.zeros((n_cls, n_ctx, dim), jnp.float32),
         params["token_suffix"]], axis=1)

    prompts = prompt_learner_forward(params, lam)
    prompts = jax.block_until_ready(prompts)

    ref = prompt_learner_reference(params, lam)
    assert prompts.shape == (n_cls, seq_len, dim)
    # Prefix / suffix rows come straight from the aliased template: exact.
    assert jnp.array_equal(prompts[:, :1], ref[:, :1]), "prefix mismatch"
    assert jnp.array_equal(prompts[:, 1 + n_ctx:], ref[:, 1 + n_ctx:]), \
        "suffix mismatch"
    # ctx slab: f32 MXU matmuls inside the kernel vs XLA reference.
    assert jnp.allclose(prompts[:, 1:1 + n_ctx], ref[:, 1:1 + n_ctx],
                        atol=1e-4, rtol=1e-4), "ctx slab mismatch vs reference"

    # TODO(synk): the original module also iterates a torch DataLoader over
    # rating data inside forward() just to fetch user_ids; here user_ids are
    # plain inputs.
    print("KERNEL_OK")
</pallas_src>

<mosaic_0001>
module attributes {stable_mosaic.version = 11 : i64} {
  func.func @_prompt_ctx_kernel(%arg0: memref<1x1xf32, #tpu.memory_space<smem>>, %arg1: memref<8x128xf32, #tpu.memory_space<vmem>>, %arg2: memref<8x128xf32, #tpu.memory_space<vmem>>, %arg3: memref<8x8x128xf32, #tpu.memory_space<vmem>>, %arg4: memref<8x8x128xf32, #tpu.memory_space<vmem>>, %arg5: memref<128x128xf32, #tpu.memory_space<vmem>>, %arg6: memref<1x128xf32, #tpu.memory_space<vmem>>, %arg7: memref<4x8xf32, #tpu.memory_space<vmem>>, %arg8: memref<4x1xf32, #tpu.memory_space<vmem>>, %arg9: memref<4x128xf32, #tpu.memory_space<vmem>>, %arg10: memref<8x16x128xf32, #tpu.memory_space<any>>, %arg11: memref<8x16x128xf32, #tpu.memory_space<any>>, %arg12: memref<8x4x128xf32, #tpu.memory_space<vmem>>, %arg13: memref<!tpu.dma_semaphore, #tpu.memory_space<semaphore_mem>>) attributes {dimension_semantics = [], scalar_prefetch = 0 : i64, scratch_operands = 2 : i64, tpu.core_type = #tpu.core_type<tc>} {
    %c0 = arith.constant 0 : index
    %c0_0 = arith.constant 0 : index
    %0 = vector.load %arg1[%c0, %c0_0] : memref<8x128xf32, #tpu.memory_space<vmem>>, vector<8x128xf32>
    %c0_1 = arith.constant 0 : index
    %c0_2 = arith.constant 0 : index
    %c0_3 = arith.constant 0 : index
    %1 = vector.load %arg4[%c0_1, %c0_2, %c0_3] : memref<8x8x128xf32, #tpu.memory_space<vmem>>, vector<8x8x128xf32>
    %c0_4 = arith.constant 0 : index
    %c0_5 = arith.constant 0 : index
    %c0_6 = arith.constant 0 : index
    %2 = vector.load %arg3[%c0_4, %c0_5, %c0_6] : memref<8x8x128xf32, #tpu.memory_space<vmem>>, vector<8x8x128xf32>
    %3 = vector.shape_cast %0 : vector<8x128xf32> to vector<8x1x128xf32>
    %4 = vector.broadcast %3 : vector<8x1x128xf32> to vector<8x8x128xf32>
    %5 = arith.mulf %4, %1 : vector<8x8x128xf32>
    %cst = arith.constant dense<0.000000e+00> : vector<8x8xf32>
    %6 = vector.multi_reduction <add>, %5, %cst [2] : vector<8x8x128xf32> to vector<8x8xf32>
    %cst_7 = arith.constant dense<0xFF800000> : vector<8xf32>
    %7 = vector.multi_reduction <maximumf>, %6, %cst_7 [1] : vector<8x8xf32> to vector<8xf32>
    %8 = vector.shape_cast %7 : vector<8xf32> to vector<8x1xf32>
    %9 = vector.broadcast %8 : vector<8x1xf32> to vector<8x8xf32>
    %10 = arith.subf %6, %9 : vector<8x8xf32>
    %11 = math.exp %10 : vector<8x8xf32>
    %cst_8 = arith.constant dense<0.000000e+00> : vector<8xf32>
    %12 = vector.multi_reduction <add>, %11, %cst_8 [1] : vector<8x8xf32> to vector<8xf32>
    %13 = vector.shape_cast %12 : vector<8xf32> to vector<8x1xf32>
    %14 = vector.broadcast %13 : vector<8x1xf32> to vector<8x8xf32>
    %15 = arith.divf %11, %14 : vector<8x8xf32>
    %16 = vector.shape_cast %15 : vector<8x8xf32> to vector<8x8x1xf32>
    %17 = vector.broadcast %16 : vector<8x8x1xf32> to vector<8x8x128xf32>
    %18 = arith.mulf %17, %2 : vector<8x8x128xf32>
    %cst_9 = arith.constant dense<0.000000e+00> : vector<8x128xf32>
    %19 = vector.multi_reduction <add>, %18, %cst_9 [1] : vector<8x8x128xf32> to vector<8x128xf32>
    %c0_10 = arith.constant 0 : index
    %c0_11 = arith.constant 0 : index
    %20 = vector.load %arg2[%c0_10, %c0_11] : memref<8x128xf32, #tpu.memory_space<vmem>>, vector<8x128xf32>
    %21 = arith.addf %20, %19 : vector<8x128xf32>
    %c0_12 = arith.constant 0 : index
    %c0_13 = arith.constant 0 : index
    %22 = vector.load %arg5[%c0_12, %c0_13] : memref<128x128xf32, #tpu.memory_space<vmem>>, vector<128x128xf32>
    %cst_14 = arith.constant dense<0.000000e+00> : vector<8x128xf32>
    %23 = tpu.matmul %21, %22, %cst_14 {dimension_numbers = #tpu.dot_dimension_numbers<[1], [1], [0], [0], [0, 0, 1, 0], [], []>} : vector<8x128xf32>, vector<128x128xf32>, vector<8x128xf32> -> vector<8x128xf32>
    %c0_15 = arith.constant 0 : index
    %c0_16 = arith.constant 0 : index
    %24 = vector.load %arg6[%c0_15, %c0_16] : memref<1x128xf32, #tpu.memory_space<vmem>>, vector<1x128xf32>
    %25 = vector.broadcast %24 : vector<1x128xf32> to vector<8x128xf32>
    %26 = arith.addf %23, %25 : vector<8x128xf32>
    %27 = math.tanh %26 : vector<8x128xf32>
    %c0_17 = arith.constant 0 : index
    %c0_18 = arith.constant 0 : index
    %28 = vector.load %arg7[%c0_17, %c0_18] : memref<4x8xf32, #tpu.memory_space<vmem>>, vector<4x8xf32>
    %cst_19 = arith.constant dense<0.000000e+00> : vector<4x128xf32>
    %29 = tpu.matmul %28, %27, %cst_19 {dimension_numbers = #tpu.dot_dimension_numbers<[1], [0], [0], [1], [0, 0, 1, 1], [], []>} : vector<4x8xf32>, vector<8x128xf32>, vector<4x128xf32> -> vector<4x128xf32>
    %c0_20 = arith.constant 0 : index
    %c0_21 = arith.constant 0 : index
    %30 = vector.load %arg8[%c0_20, %c0_21] : memref<4x1xf32, #tpu.memory_space<vmem>>, vector<4x1xf32>
    %31 = vector.broadcast %30 : vector<4x1xf32> to vector<4x128xf32>
    %32 = arith.addf %29, %31 : vector<4x128xf32>
    %c0_22 = arith.constant 0 : index
    %c0_23 = arith.constant 0 : index
    %33 = memref.load %arg0[%c0_22, %c0_23] : memref<1x1xf32, #tpu.memory_space<smem>>
    %c0_24 = arith.constant 0 : index
    %c0_25 = arith.constant 0 : index
    %34 = vector.load %arg9[%c0_24, %c0_25] : memref<4x128xf32, #tpu.memory_space<vmem>>, vector<4x128xf32>
    %35 = vector.broadcast %33 : f32 to vector<4x128xf32>
    %36 = arith.mulf %35, %32 : vector<4x128xf32>
    %37 = arith.addf %34, %36 : vector<4x128xf32>
    %38 = vector.shape_cast %37 : vector<4x128xf32> to vector<1x4x128xf32>
    %39 = vector.shape_cast %38 : vector<1x4x128xf32> to vector<1x4x128xf32>
    %40 = vector.broadcast %39 : vector<1x4x128xf32> to vector<8x4x128xf32>
    %c0_26 = arith.constant 0 : index
    %c0_27 = arith.constant 0 : index
    %c0_28 = arith.constant 0 : index
    %41 = vector.load %arg12[%c0_26, %c0_27, %c0_28] : memref<8x4x128xf32, #tpu.memory_space<vmem>>, vector<8x4x128xf32>
    tpu.vector_store %arg12[%c0_26, %c0_27, %c0_28], %40 {strides = array<i32>} : memref<8x4x128xf32, #tpu.memory_space<vmem>>, vector<8x4x128xf32>,
    %c0_i32 = arith.constant 0 : i32
    %c1_i32 = arith.constant 1 : i32
    %c0_i32_29 = arith.constant 0 : i32
    %42 = tpu.memref_slice %arg11[%c0_i32, %c1_i32, %c0_i32_29] : memref<8x16x128xf32, #tpu.memory_space<any>> -> memref<8x4x128xf32, #tpu.memory_space<any>>
    tpu.enqueue_dma source(%arg12 : memref<8x4x128xf32, #tpu.memory_space<vmem>>) target(%42 : memref<8x4x128xf32, #tpu.memory_space<any>>) target_semaphore(%arg13 : memref<!tpu.dma_semaphore, #tpu.memory_space<semaphore_mem>>)
    %c0_i32_30 = arith.constant 0 : i32
    %c1_i32_31 = arith.constant 1 : i32
    %c0_i32_32 = arith.constant 0 : i32
    %43 = tpu.memref_slice %arg11[%c0_i32_30, %c1_i32_31, %c0_i32_32] : memref<8x16x128xf32, #tpu.memory_space<any>> -> memref<8x4x128xf32, #tpu.memory_space<any>>
    tpu.wait_dma2 semaphore(%arg13 : memref<!tpu.dma_semaphore, #tpu.memory_space<semaphore_mem>>) src(%arg12 : memref<8x4x128xf32, #tpu.memory_space<vmem>>) dst(%43 : memref<8x4x128xf32, #tpu.memory_space<any>>)
    return
  }
}

</mosaic_0001>

<llo_original>
// kernel: tpu_custom_call.1
$region0: #{tpu_custom_call.1}
  #allocation0 [shape = 'u32[]', space=smem, size = 0x4, offset = 0x4, fixed_abs, tag = 'smem constant byte address 0x4 - core index']
  #allocation1 [shape = 'u32[72,128]{1,0:T(1,128)}', space=vmem, size = 0x9000, scoped, tag = 'internal scratch']
  #allocation2 [shape = 'f32[8,4,128]{2,1,0:T(4,128)}', space=vmem, size = 0x4000, scoped, tag = 'scratch operand']
  #allocation3 [shape = 's32[1]{0}', space=sflag, size = 0x4, scoped, tag = 'scratch operand']
  #allocation4 [shape = 'f32[1,1]{1,0:T(1,128)S(6)}', space=smem, size = 0x200, scoped, tag = 'scoped memory for tpu_custom_call.1']
  #allocation9 [shape = 's32[]', space=sflag, size = 0x4, offset = 0, fixed_abs, tag = 'sflag constant byte address 0x0 - dummy sync flag']
  %s0 = inlined_call_operand.<no memory space> [shape: f32[1,1], index: 0, kind: input, shape index: {}]
  %s1 = inlined_call_operand.vmem [shape: f32[8,128], index: 1, kind: input, shape index: {}]
  %s2 = inlined_call_operand.hbm [shape: f32[8,128], index: 2, kind: input, shape index: {}]
  %s3 = inlined_call_operand.vmem [shape: f32[8,8,128], index: 3, kind: input, shape index: {}]
  %s4 = inlined_call_operand.vmem [shape: f32[8,8,128], index: 4, kind: input, shape index: {}]
  %s5 = inlined_call_operand.vmem [shape: f32[128,128], index: 5, kind: input, shape index: {}]
  %s6 = inlined_call_operand.vmem [shape: f32[1,128], index: 6, kind: input, shape index: {}]
  %s7 = inlined_call_operand.vmem [shape: f32[4,8], index: 7, kind: input, shape index: {}]
  %s8 = inlined_call_operand.vmem [shape: f32[4,1], index: 8, kind: input, shape index: {}]
  %s9 = inlined_call_operand.hbm [shape: f32[4,128], index: 9, kind: input, shape index: {}]
  %s10 = inlined_call_operand.hbm [shape: f32[8,16,128], index: 10, kind: input, shape index: {}, may-alias: {10,11}]
  %s11 = inlined_call_operand.hbm [shape: f32[8,16,128], index: 11, kind: output, shape index: {}, may-alias: {10,11}]
  %s12 = sld [smem:[#allocation0]]
  $region50: #{tpu_custom_call.1} parent=0
    _
  %s14 = ssub.s32 1, %s12
  %s15 = scalar_select 0, %s14, %s12
  %16 = sst [smem:[#allocation4]] %s0
  $region1: #{tpu_custom_call.1} parent=0
    #allocation5 [shape = 'u8[4096]{0}', space=vmem, size = 0x1000, scoped, tag = 'input window, operand 2, single buffered']
    #allocation6 [shape = 's32[1]{0}', space=sflag, size = 0x4, scoped, tag = 'scoped memory for tpu_custom_call.1']
    #allocation7 [shape = 'u8[2048]{0}', space=vmem, size = 0x800, scoped, tag = 'input window, operand 9, single buffered']
    #allocation8 [shape = 's32[1]{0}', space=sflag, size = 0x4, scoped, tag = 'scoped memory for tpu_custom_call.1']
    %17 = vsyncpa [#allocation6], 0
    %18 = vsyncpa [#allocation8], 0
    // Predicated region
    $region2: #{tpu_custom_call.1} parent=1 // pred_check
      _
    $region3: #{tpu_custom_call.1} parent=1 // pred_check_branch
      %20 = sbr.rel (0) target = $region5
    $region4: #{tpu_custom_call.1} parent=1 // pred_region
      _
    $region5: #{tpu_custom_call.1} parent=1 // pred_fallthru
      _
    // Predicated region
    $region6: #{tpu_custom_call.1} parent=1 // pred_check
      _
    $region7: #{tpu_custom_call.1} parent=1 // pred_check_branch
      %22 = sbr.rel (0) target = $region9
    $region8: #{tpu_custom_call.1} parent=1 // pred_region
      _
    $region9: #{tpu_custom_call.1} parent=1 // pred_fallthru
      _
    // Predicated region
    $region10: #{tpu_custom_call.1} parent=1 // pred_check
      _
    $region11: #{tpu_custom_call.1} parent=1 // pred_check_branch
      %24 = sbr.rel (0) target = $region13
    $region12: #{tpu_custom_call.1} parent=1 // pred_region
      %26 = vsyncadd [#allocation6], 0
      %s28 = sshll.u32 %s2, 4
      %s29 = int_to_ptr.hbm [resolvable:$true] %s28
      %s30 = sshll.u32 [#allocation5], 4
      %s31 = int_to_ptr.vmem [resolvable:$true] %s30
      %33 = dma.hbm_to_vmem [thread:$0]  %s29, 128, %s31, [#allocation6]
    $region13: #{tpu_custom_call.1} parent=1 // pred_fallthru
      _
    // Predicated region
    $region14: #{tpu_custom_call.1} parent=1 // pred_check
      _
    $region15: #{tpu_custom_call.1} parent=1 // pred_check_branch
      %35 = sbr.rel (0) target = $region17
    $region16: #{tpu_custom_call.1} parent=1 // pred_region
      _
    $region17: #{tpu_custom_call.1} parent=1 // pred_fallthru
      _
    // Predicated region
    $region18: #{tpu_custom_call.1} parent=1 // pred_check
      _
    $region19: #{tpu_custom_call.1} parent=1 // pred_check_branch
      %37 = sbr.rel (0) target = $region21
    $region20: #{tpu_custom_call.1} parent=1 // pred_region
      _
    $region21: #{tpu_custom_call.1} parent=1 // pred_fallthru
      _
    // Predicated region
    $region22: #{tpu_custom_call.1} parent=1 // pred_check
      _
    $region23: #{tpu_custom_call.1} parent=1 // pred_check_branch
      %39 = sbr.rel (0) target = $region25
    $region24: #{tpu_custom_call.1} parent=1 // pred_region
      _
    $region25: #{tpu_custom_call.1} parent=1 // pred_fallthru
      _
    // Predicated region
    $region26: #{tpu_custom_call.1} parent=1 // pred_check
      _
    $region27: #{tpu_custom_call.1} parent=1 // pred_check_branch
      %41 = sbr.rel (0) target = $region29
    $region28: #{tpu_custom_call.1} parent=1 // pred_region
      _
    $region29: #{tpu_custom_call.1} parent=1 // pred_fallthru
      _
    // Predicated region
    $region30: #{tpu_custom_call.1} parent=1 // pred_check
      _
    $region31: #{tpu_custom_call.1} parent=1 // pred_check_branch
      %43 = sbr.rel (0) target = $region33
    $region32: #{tpu_custom_call.1} parent=1 // pred_region
      _
    $region33: #{tpu_custom_call.1} parent=1 // pred_fallthru
      _
    // Predicated region
    $region34: #{tpu_custom_call.1} parent=1 // pred_check
      _
    $region35: #{tpu_custom_call.1} parent=1 // pred_check_branch
      %45 = sbr.rel (0) target = $region37
    $region36: #{tpu_custom_call.1} parent=1 // pred_region
      _
    $region37: #{tpu_custom_call.1} parent=1 // pred_fallthru
      _
    // Predicated region
    $region38: #{tpu_custom_call.1} parent=1 // pred_check
      _
    $region39: #{tpu_custom_call.1} parent=1 // pred_check_branch
      %47 = sbr.rel (0) target = $region41
    $region40: #{tpu_custom_call.1} parent=1 // pred_region
      %49 = vsyncadd [#allocation8], 0
      %s51 = sshll.u32 %s9, 4
      %s52 = int_to_ptr.hbm [resolvable:$true] %s51
      %s53 = sshll.u32 [#allocation7], 4
      %s54 = int_to_ptr.vmem [resolvable:$true] %s53
      %56 = dma.hbm_to_vmem [thread:$0]  %s52, 64, %s54, [#allocation8]
    $region41: #{tpu_custom_call.1} parent=1 // pred_fallthru
      _
    // Predicated region
    $region42: #{tpu_custom_call.1} parent=1 // pred_check
      _
    $region43: #{tpu_custom_call.1} parent=1 // pred_check_branch
      %58 = sbr.rel (0) target = $region45
    $region44: #{tpu_custom_call.1} parent=1 // pred_region
      %60 = dma.done [#allocation6], 128
    $region45: #{tpu_custom_call.1} parent=1 // pred_fallthru
      _
    // Predicated region
    $region46: #{tpu_custom_call.1} parent=1 // pred_check
      _
    $region47: #{tpu_custom_call.1} parent=1 // pred_check_branch
      %62 = sbr.rel (0) target = $region49
    $region48: #{tpu_custom_call.1} parent=1 // pred_region
      %64 = dma.done [#allocation8], 64
    $region49: #{tpu_custom_call.1} parent=1 // pred_fallthru
      _
    %v65 = vld [vmem:[%s1] sm:$0xff]
    %v66 = vld [vmem:[%s4] sm:$0xff]
    %v67 = vld [vmem:[%s4 + $0x8] sm:$0xff]
    %v68 = vld [vmem:[%s4 + $0x10] sm:$0xff]
    %v69 = vld [vmem:[%s4 + $0x18] sm:$0xff]
    %v70 = vld [vmem:[%s4 + $0x20] sm:$0xff]
    %v71 = vld [vmem:[%s4 + $0x28] sm:$0xff]
    %v72 = vld [vmem:[%s4 + $0x30] sm:$0xff]
    %v73 = vld [vmem:[%s4 + $0x38] sm:$0xff]
    %v74 = vld [vmem:[%s3] sm:$0xff]
    %v75 = vld [vmem:[%s3 + $0x8] sm:$0xff]
    %v76 = vld [vmem:[%s3 + $0x10] sm:$0xff]
    %v77 = vld [vmem:[%s3 + $0x18] sm:$0xff]
    %v78 = vld [vmem:[%s3 + $0x20] sm:$0xff]
    %v79 = vld [vmem:[%s3 + $0x28] sm:$0xff]
    %v80 = vld [vmem:[%s3 + $0x30] sm:$0xff]
    %v81 = vld [vmem:[%s3 + $0x38] sm:$0xff]
    %v83 = vrot.slane %v65, 1
    %v84 = vrot.slane %v65, 2
    %v85 = vrot.slane %v65, 3
    %v86 = vrot.slane %v65, 4
    %v87 = vrot.slane %v65, 5
    %v88 = vrot.slane %v65, 6
    %v89 = vrot.slane %v65, 7
    %v90 = vperm.slane %v65, 0
    %v91 = vperm.slane %v83, 0
    %v92 = vperm.slane %v84, 0
    %v93 = vperm.slane %v85, 0
    %v94 = vperm.slane %v86, 0
    %v95 = vperm.slane %v87, 0
    %v96 = vperm.slane %v88, 0
    %v97 = vperm.slane %v89, 0
    %v106 = vmul.f32 %v90, %v66
    %v107 = vmul.f32 %v91, %v67
    %v108 = vmul.f32 %v92, %v68
    %v109 = vmul.f32 %v93, %v69
    %v110 = vmul.f32 %v94, %v70
    %v111 = vmul.f32 %v95, %v71
    %v112 = vmul.f32 %v96, %v72
    %v113 = vmul.f32 %v97, %v73
    %114 = vadd.xlane.f32.xlu0 %v106
    %v115 = vpop.xlane.xlu0 %114
    %116 = vadd.xlane.f32.xlu0 %v107
    %v117 = vpop.xlane.xlu0 %116
    %118 = vadd.xlane.f32.xlu0 %v108
    %v119 = vpop.xlane.xlu0 %118
    %120 = vadd.xlane.f32.xlu0 %v109
    %v121 = vpop.xlane.xlu0 %120
    %122 = vadd.xlane.f32.xlu0 %v110
    %v123 = vpop.xlane.xlu0 %122
    %124 = vadd.xlane.f32.xlu0 %v111
    %v125 = vpop.xlane.xlu0 %124
    %126 = vadd.xlane.f32.xlu0 %v112
    %v127 = vpop.xlane.xlu0 %126
    %128 = vadd.xlane.f32.xlu0 %v113
    %v129 = vpop.xlane.xlu0 %128
    %v138 = vlaneseq
    %v139 = vand.u32 %v138, 127
    %v140 = vperm.slane %v115, %v139
    %v141 = vperm.slane %v117, %v139
    %v142 = vperm.slane %v119, %v139
    %v143 = vperm.slane %v121, %v139
    %v144 = vperm.slane %v123, %v139
    %v145 = vperm.slane %v125, %v139
    %v146 = vperm.slane %v127, %v139
    %v147 = vperm.slane %v129, %v139
    %vm148 = vcmask 1041409
    %v149 = vsel %vm148, %v141, %v140
    %vm150 = vcmask 1042434
    %v151 = vsel %vm150, %v142, %v149
    %vm152 = vcmask 1043459
    %v153 = vsel %vm152, %v143, %v151
    %vm154 = vcmask 1044484
    %v155 = vsel %vm154, %v144, %v153
    %vm156 = vcmask 1045509
    %v157 = vsel %vm156, %v145, %v155
    %vm158 = vcmask 1046534
    %v159 = vsel %vm158, %v146, %v157
    %vm160 = vcmask 1047559
    %v161 = vsel %vm160, %v147, %v159
    %vm163 = vcmask 64512
    %v164 = vsel %vm163, %v161, -inf
    %165 = vmax.xlane.f32.xlu0 %v164
    %v166 = vpop.xlane.xlu0 %165
    %v168 = vperm.slane %v166, 0
    %v169 = vperm.slane %v166, 1
    %v170 = vperm.slane %v166, 2
    %v171 = vperm.slane %v166, 3
    %v172 = vperm.slane %v166, 4
    %v173 = vperm.slane %v166, 5
    %v174 = vperm.slane %v166, 6
    %v175 = vperm.slane %v166, 7
    %v184 = vsub.f32 %v115, %v168
    %v185 = vsub.f32 %v117, %v169
    %v186 = vsub.f32 %v119, %v170
    %v187 = vsub.f32 %v121, %v171
    %v188 = vsub.f32 %v123, %v172
    %v189 = vsub.f32 %v125, %v173
    %v190 = vsub.f32 %v127, %v174
    %v191 = vsub.f32 %v129, %v175
    %v192 = vmul.f32 %v184, 1.442695
    %v193 = vpow.pop %v192
    %v194 = vmul.f32 %v185, 1.442695
    %v195 = vpow.pop %v194
    %v196 = vmul.f32 %v186, 1.442695
    %v197 = vpow.pop %v196
    %v198 = vmul.f32 %v187, 1.442695
    %v199 = vpow.pop %v198
    %v200 = vmul.f32 %v188, 1.442695
    %v201 = vpow.pop %v200
    %v202 = vmul.f32 %v189, 1.442695
    %v203 = vpow.pop %v202
    %v204 = vmul.f32 %v190, 1.442695
    %v205 = vpow.pop %v204
    %v206 = vmul.f32 %v191, 1.442695
    %v207 = vpow.pop %v206
    %216 = vset.pattern.permute.xlu0 0
    %217 = vperm.xlu0 %216, %v193
    %v218 = vpop.permute.xlu0 %217
    %219 = vset.pattern.permute.xlu0 0
    %220 = vperm.xlu0 %219, %v195
    %v221 = vpop.permute.xlu0 %220
    %222 = vset.pattern.permute.xlu0 0
    %223 = vperm.xlu0 %222, %v197
    %v224 = vpop.permute.xlu0 %223
    %225 = vset.pattern.permute.xlu0 0
    %226 = vperm.xlu0 %225, %v199
    %v227 = vpop.permute.xlu0 %226
    %228 = vset.pattern.permute.xlu0 0
    %229 = vperm.xlu0 %228, %v201
    %v230 = vpop.permute.xlu0 %229
    %231 = vset.pattern.permute.xlu0 0
    %232 = vperm.xlu0 %231, %v203
    %v233 = vpop.permute.xlu0 %232
    %234 = vset.pattern.permute.xlu0 0
    %235 = vperm.xlu0 %234, %v205
    %v236 = vpop.permute.xlu0 %235
    %237 = vset.pattern.permute.xlu0 0
    %238 = vperm.xlu0 %237, %v207
    %v239 = vpop.permute.xlu0 %238
    %v240 = vperm.slane %v218, %v139
    %v241 = vperm.slane %v221, %v139
    %v242 = vperm.slane %v224, %v139
    %v243 = vperm.slane %v227, %v139
    %v244 = vperm.slane %v230, %v139
    %v245 = vperm.slane %v233, %v139
    %v246 = vperm.slane %v236, %v139
    %v247 = vperm.slane %v239, %v139
    %v248 = vsel %vm148, %v241, %v240
    %v249 = vsel %vm150, %v242, %v248
    %v250 = vsel %vm152, %v243, %v249
    %v251 = vsel %vm154, %v244, %v250
    %v252 = vsel %vm156, %v245, %v251
    %v253 = vsel %vm158, %v246, %v252
    %v254 = vsel %vm160, %v247, %v253
    %v256 = vsel %vm163, %v254, 0.0
    %257 = vadd.xlane.f32.xlu0 %v256
    %v258 = vpop.xlane.xlu0 %257
    %v260 = vperm.slane %v258, 0
    %v261 = vperm.slane %v258, 1
    %v262 = vperm.slane %v258, 2
    %v263 = vperm.slane %v258, 3
    %v264 = vperm.slane %v258, 4
    %v265 = vperm.slane %v258, 5
    %v266 = vperm.slane %v258, 6
    %v267 = vperm.slane %v258, 7
    %v276 = vrcp.pop %v260
    %v277 = vmul.f32 %v260, %v276
    %v278 = vsub.f32 1.0, %v277
    %v279 = vmul.f32 %v276, %v278
    %v280 = vadd.f32 %v276, %v279
    %vm281 = vweird.f32 %v260
    %vm282 = vweird.f32 %v276
    %vm283 = vmor %vm281, %vm282
    %v284 = vsel %vm283, %v276, %v280
    %v285 = vand.u32 2147483647, %v260
    %vm286 = vcmp.eq.f32.partialorder %v285, 8.507059e+37
    %v287 = vand.u32 %v260, 2147483648
    %v288 = vor.u32 1.1754944e-38, %v287
    %v289 = vsel %vm286, %v288, %v284
    %v290 = vmul.f32 %v193, %v289
    %v291 = vrcp.pop %v261
    %v292 = vmul.f32 %v261, %v291
    %v293 = vsub.f32 1.0, %v292
    %v294 = vmul.f32 %v291, %v293
    %v295 = vadd.f32 %v291, %v294
    %vm296 = vweird.f32 %v261
    %vm297 = vweird.f32 %v291
    %vm298 = vmor %vm296, %vm297
    %v299 = vsel %vm298, %v291, %v295
    %v300 = vand.u32 2147483647, %v261
    %vm301 = vcmp.eq.f32.partialorder %v300, 8.507059e+37
    %v302 = vand.u32 %v261, 2147483648
    %v303 = vor.u32 1.1754944e-38, %v302
    %v304 = vsel %vm301, %v303, %v299
    %v305 = vmul.f32 %v195, %v304
    %v306 = vrcp.pop %v262
    %v307 = vmul.f32 %v262, %v306
    %v308 = vsub.f32 1.0, %v307
    %v309 = vmul.f32 %v306, %v308
    %v310 = vadd.f32 %v306, %v309
    %vm311 = vweird.f32 %v262
    %vm312 = vweird.f32 %v306
    %vm313 = vmor %vm311, %vm312
    %v314 = vsel %vm313, %v306, %v310
    %v315 = vand.u32 2147483647, %v262
    %vm316 = vcmp.eq.f32.partialorder %v315, 8.507059e+37
    %v317 = vand.u32 %v262, 2147483648
    %v318 = vor.u32 1.1754944e-38, %v317
    %v319 = vsel %vm316, %v318, %v314
    %v320 = vmul.f32 %v197, %v319
    %v321 = vrcp.pop %v263
    %v322 = vmul.f32 %v263, %v321
    %v323 = vsub.f32 1.0, %v322
    %v324 = vmul.f32 %v321, %v323
    %v325 = vadd.f32 %v321, %v324
    %vm326 = vweird.f32 %v263
    %vm327 = vweird.f32 %v321
    %vm328 = vmor %vm326, %vm327
    %v329 = vsel %vm328, %v321, %v325
    %v330 = vand.u32 2147483647, %v263
    %vm331 = vcmp.eq.f32.partialorder %v330, 8.507059e+37
    %v332 = vand.u32 %v263, 2147483648
    %v333 = vor.u32 1.1754944e-38, %v332
    %v334 = vsel %vm331, %v333, %v329
    %v335 = vmul.f32 %v199, %v334
    %v336 = vrcp.pop %v264
    %v337 = vmul.f32 %v264, %v336
    %v338 = vsub.f32 1.0, %v337
    %v339 = vmul.f32 %v336, %v338
    %v340 = vadd.f32 %v336, %v339
    %vm341 = vweird.f32 %v264
    %vm342 = vweird.f32 %v336
    %vm343 = vmor %vm341, %vm342
    %v344 = vsel %vm343, %v336, %v340
    %v345 = vand.u32 2147483647, %v264
    %vm346 = vcmp.eq.f32.partialorder %v345, 8.507059e+37
    %v347 = vand.u32 %v264, 2147483648
    %v348 = vor.u32 1.1754944e-38, %v347
    %v349 = vsel %vm346, %v348, %v344
    %v350 = vmul.f32 %v201, %v349
    %v351 = vrcp.pop %v265
    %v352 = vmul.f32 %v265, %v351
    %v353 = vsub.f32 1.0, %v352
    %v354 = vmul.f32 %v351, %v353
    %v355 = vadd.f32 %v351, %v354
    %vm356 = vweird.f32 %v265
    %vm357 = vweird.f32 %v351
    %vm358 = vmor %vm356, %vm357
    %v359 = vsel %vm358, %v351, %v355
    %v360 = vand.u32 2147483647, %v265
    %vm361 = vcmp.eq.f32.partialorder %v360, 8.507059e+37
    %v362 = vand.u32 %v265, 2147483648
    %v363 = vor.u32 1.1754944e-38, %v362
    %v364 = vsel %vm361, %v363, %v359
    %v365 = vmul.f32 %v203, %v364
    %v366 = vrcp.pop %v266
    %v367 = vmul.f32 %v266, %v366
    %v368 = vsub.f32 1.0, %v367
    %v369 = vmul.f32 %v366, %v368
    %v370 = vadd.f32 %v366, %v369
    %vm371 = vweird.f32 %v266
    %vm372 = vweird.f32 %v366
    %vm373 = vmor %vm371, %vm372
    %v374 = vsel %vm373, %v366, %v370
    %v375 = vand.u32 2147483647, %v266
    %vm376 = vcmp.eq.f32.partialorder %v375, 8.507059e+37
    %v377 = vand.u32 %v266, 2147483648
    %v378 = vor.u32 1.1754944e-38, %v377
    %v379 = vsel %vm376, %v378, %v374
    %v380 = vmul.f32 %v205, %v379
    %v381 = vrcp.pop %v267
    %v382 = vmul.f32 %v267, %v381
    %v383 = vsub.f32 1.0, %v382
    %v384 = vmul.f32 %v381, %v383
    %v385 = vadd.f32 %v381, %v384
    %vm386 = vweird.f32 %v267
    %vm387 = vweird.f32 %v381
    %vm388 = vmor %vm386, %vm387
    %v389 = vsel %vm388, %v381, %v385
    %v390 = vand.u32 2147483647, %v267
    %vm391 = vcmp.eq.f32.partialorder %v390, 8.507059e+37
    %v392 = vand.u32 %v267, 2147483648
    %v393 = vor.u32 1.1754944e-38, %v392
    %v394 = vsel %vm391, %v393, %v389
    %v395 = vmul.f32 %v207, %v394
    %397 = vset.pattern.permute.xlu0 0
    %398 = vperm.xlu0 %397, %v290
    %v399 = vpop.permute.xlu0 %398
    %402 = vset.pattern.permute.xlu0 0
    %403 = vperm.xlu0 %402, %v305
    %v404 = vpop.permute.xlu0 %403
    %407 = vset.pattern.permute.xlu0 0
    %408 = vperm.xlu0 %407, %v320
    %v409 = vpop.permute.xlu0 %408
    %412 = vset.pattern.permute.xlu0 0
    %413 = vperm.xlu0 %412, %v335
    %v414 = vpop.permute.xlu0 %413
    %417 = vset.pattern.permute.xlu0 0
    %418 = vperm.xlu0 %417, %v350
    %v419 = vpop.permute.xlu0 %418
    %422 = vset.pattern.permute.xlu0 0
    %423 = vperm.xlu0 %422, %v365
    %v424 = vpop.permute.xlu0 %423
    %427 = vset.pattern.permute.xlu0 0
    %428 = vperm.xlu0 %427, %v380
    %v429 = vpop.permute.xlu0 %428
    %432 = vset.pattern.permute.xlu0 0
    %433 = vperm.xlu0 %432, %v395
    %v434 = vpop.permute.xlu0 %433
    %v436 = vmul.f32 %v399, %v74
    %v437 = vmul.f32 %v404, %v75
    %v438 = vmul.f32 %v409, %v76
    %v439 = vmul.f32 %v414, %v77
    %v440 = vmul.f32 %v419, %v78
    %v441 = vmul.f32 %v424, %v79
    %v442 = vmul.f32 %v429, %v80
    %v443 = vmul.f32 %v434, %v81
    %v444 = vrot.slane %v436, 4
    %v445 = vadd.f32 %v436, %v444
    %v446 = vrot.slane %v445, 2
    %v447 = vadd.f32 %v445, %v446
    %v448 = vrot.slane %v447, 1
    %v449 = vadd.f32 %v447, %v448
    %v450 = vrot.slane %v437, 4
    %v451 = vadd.f32 %v437, %v450
    %v452 = vrot.slane %v451, 2
    %v453 = vadd.f32 %v451, %v452
    %v454 = vrot.slane %v453, 1
    %v455 = vadd.f32 %v453, %v454
    %v456 = vrot.slane %v438, 4
    %v457 = vadd.f32 %v438, %v456
    %v458 = vrot.slane %v457, 2
    %v459 = vadd.f32 %v457, %v458
    %v460 = vrot.slane %v459, 1
    %v461 = vadd.f32 %v459, %v460
    %v462 = vrot.slane %v439, 4
    %v463 = vadd.f32 %v439, %v462
    %v464 = vrot.slane %v463, 2
    %v465 = vadd.f32 %v463, %v464
    %v466 = vrot.slane %v465, 1
    %v467 = vadd.f32 %v465, %v466
    %v468 = vrot.slane %v440, 4
    %v469 = vadd.f32 %v440, %v468
    %v470 = vrot.slane %v469, 2
    %v471 = vadd.f32 %v469, %v470
    %v472 = vrot.slane %v471, 1
    %v473 = vadd.f32 %v471, %v472
    %v474 = vrot.slane %v441, 4
    %v475 = vadd.f32 %v441, %v474
    %v476 = vrot.slane %v475, 2
    %v477 = vadd.f32 %v475, %v476
    %v478 = vrot.slane %v477, 1
    %v479 = vadd.f32 %v477, %v478
    %v480 = vrot.slane %v442, 4
    %v481 = vadd.f32 %v442, %v480
    %v482 = vrot.slane %v481, 2
    %v483 = vadd.f32 %v481, %v482
    %v484 = vrot.slane %v483, 1
    %v485 = vadd.f32 %v483, %v484
    %v486 = vrot.slane %v443, 4
    %v487 = vadd.f32 %v443, %v486
    %v488 = vrot.slane %v487, 2
    %v489 = vadd.f32 %v487, %v488
    %v490 = vrot.slane %v489, 1
    %v491 = vadd.f32 %v489, %v490
    %v492 = vld [vmem:[#allocation5] sm:$0xff]
    %v501 = vsel %vm148, %v455, %v449
    %v502 = vsel %vm150, %v461, %v501
    %v503 = vsel %vm152, %v467, %v502
    %v504 = vsel %vm154, %v473, %v503
    %v505 = vsel %vm156, %v479, %v504
    %v506 = vsel %vm158, %v485, %v505
    %v507 = vsel %vm160, %v491, %v506
    %v509 = vadd.f32 %v492, %v507
    %v510 = vld [vmem:[%s5] sm:$0xff]
    %v511 = vld [vmem:[%s5 + $0x8] sm:$0xff]
    %v512 = vld [vmem:[%s5 + $0x10] sm:$0xff]
    %v513 = vld [vmem:[%s5 + $0x18] sm:$0xff]
    %v514 = vld [vmem:[%s5 + $0x20] sm:$0xff]
    %v515 = vld [vmem:[%s5 + $0x28] sm:$0xff]
    %v516 = vld [vmem:[%s5 + $0x30] sm:$0xff]
    %v517 = vld [vmem:[%s5 + $0x38] sm:$0xff]
    %v518 = vld [vmem:[%s5 + $0x40] sm:$0xff]
    %v519 = vld [vmem:[%s5 + $0x48] sm:$0xff]
    %v520 = vld [vmem:[%s5 + $0x50] sm:$0xff]
    %v521 = vld [vmem:[%s5 + $0x58] sm:$0xff]
    %v522 = vld [vmem:[%s5 + $0x60] sm:$0xff]
    %v523 = vld [vmem:[%s5 + $0x68] sm:$0xff]
    %v524 = vld [vmem:[%s5 + $0x70] sm:$0xff]
    %v525 = vld [vmem:[%s5 + $0x78] sm:$0xff]
    %v526 = vld [vmem:[%s6] sm:$0x1]
    %v528 = vperm.slane %v526, 0
    %530 = vmatpush.xpose.msra.mxu0 %v525
    %531 = vmatpush.xpose.msra.mxu0 %v524
    %532 = vmatpush.xpose.msra.mxu0 %v523
    %533 = vmatpush.xpose.msra.mxu0 %v522
    %534 = vmatpush.xpose.msra.mxu0 %v521
    %535 = vmatpush.xpose.msra.mxu0 %v520
    %536 = vmatpush.xpose.msra.mxu0 %v519
    %537 = vmatpush.xpose.msra.mxu0 %v518
    %538 = vmatpush.xpose.msra.mxu0 %v517
    %539 = vmatpush.xpose.msra.mxu0 %v516
    %540 = vmatpush.xpose.msra.mxu0 %v515
    %541 = vmatpush.xpose.msra.mxu0 %v514
    %542 = vmatpush.xpose.msra.mxu0 %v513
    %543 = vmatpush.xpose.msra.mxu0 %v512
    %544 = vmatpush.xpose.msra.mxu0 %v511
    %545 = vmatpush.xpose.msra.mxu0 %v510
    %546 = vmatmul.f32.gmra.mxu0 %v509
    %v547 = vpop.f32.mrf.mxu0
    %v548 = vadd.f32 %v528, %v547
    %549 = vdwg.mxu0
    %v550 = vtanh.pop %v548
    %v551 = vld [vmem:[%s7] sm:$0xf]
    %v552 = vld [vmem:[%s8] sm:$0xf]
    %554 = vset.pattern.permute.xlu0 0
    %555 = vperm.xlu0 %554, %v552
    %v556 = vpop.permute.xlu0 %555
    %v559 = vsel %vm163, %v551, 0
    %561 = vmatpush.msra.mxu0 0.0
    %562 = vmatpush.msra.mxu0 0.0
    %563 = vmatpush.msra.mxu0 0.0
    %564 = vmatpush.msra.mxu0 0.0
    %565 = vmatpush.msra.mxu0 0.0
    %566 = vmatpush.msra.mxu0 0.0
    %567 = vmatpush.msra.mxu0 0.0
    %568 = vmatpush.msra.mxu0 0.0
    %569 = vmatpush.msra.mxu0 0.0
    %570 = vmatpush.msra.mxu0 0.0
    %571 = vmatpush.msra.mxu0 0.0
    %572 = vmatpush.msra.mxu0 0.0
    %573 = vmatpush.msra.mxu0 0.0
    %574 = vmatpush.msra.mxu0 0.0
    %575 = vmatpush.msra.mxu0 0.0
    %576 = vmatpush.msra.mxu0 %v550
    %577 = vmatmul.f32.gmra.mxu0 %v559
    %v578 = vpop.f32.mrf.mxu0
    %v579 = vadd.f32 %v556, %v578
    %580 = vdwg.mxu0
    %s581 = sld [smem:[#allocation4]]
    %v582 = vld [vmem:[#allocation7] sm:$0xf]
    %v583 = vstv %s581
    %v584 = vmul.f32 %v583, %v579
    %v585 = vadd.f32 %v582, %v584
    %586 = vst [vmem:[#allocation2] sm:$0xf] %v585
    %587 = vst [vmem:[#allocation2 + $0x4] sm:$0xf] %v585
    %588 = vst [vmem:[#allocation2 + $0x8] sm:$0xf] %v585
    %589 = vst [vmem:[#allocation2 + $0xc] sm:$0xf] %v585
    %590 = vst [vmem:[#allocation2 + $0x10] sm:$0xf] %v585
    %591 = vst [vmem:[#allocation2 + $0x14] sm:$0xf] %v585
    %592 = vst [vmem:[#allocation2 + $0x18] sm:$0xf] %v585
    %593 = vst [vmem:[#allocation2 + $0x1c] sm:$0xf] %v585
    %s594 = scalar_lea.hbm %s11, 1
    %s595 = sshll.u32 [#allocation2], 4
    %s596 = int_to_ptr.vmem [resolvable:$true] %s595
    %s597 = sshll.u32 %s594, 4
    %s598 = int_to_ptr.hbm [resolvable:$true] %s597
    %602 = dma.vmem_to_hbm [thread:$0]  %s596, 512, %s598, [#allocation3], 64, 256, 4
    %s603 = smul.u32 8, 4
    %s604 = smul.u32 %s603, 1
    %s605 = sshll.u32 %s604, 4
    %606 = dma.done [#allocation3], %s605
    %607 = vsyncpa [#allocation6], 1
    %608 = vsyncpa [#allocation8], 1
  %609 = vsyncmov [#allocation3]
  %s610 = vpop.sfrf %609
  %p611 = scmp.eq.s32.totalorder %s610, 0
  %p612 = pneg %p611
  %614 = shalt.err (%p612)

</llo_original>
